<compile_context>
chip_gen: v7x
topology: tpu7x:2x2x1
jax: 0.10.0
libtpu: 0.0.40
codegen_flags: <defaults>
</compile_context>

<pallas_src>
import functools

import jax
import jax.numpy as jnp
from jax.experimental import pallas as pl
from jax.experimental.pallas import tpu as pltpu


def _relu_conv_kernel(x_ref, w_ref, o_ref, *, W, KH, KW, HoW_pad):
    """Fused ReLU + VALID conv over the whole batch, lane-dense layout.

    x_ref : (Rpad, Lpad)        flattened, sublane/lane-zero-padded images
    w_ref : (Mpad, KH*KW*Rpad)  block-diagonal flattened conv weights
    o_ref : (Mpad, HoW_pad)     full-width output rows (extra rows/cols are
                                zero/garbage, sliced off in the wrapper)
    """
    # SubModule: Identity followed by ReLU (quant/dequant stubs are identity).
    x = jnp.maximum(x_ref[...], 0.0)

    # im2col via static lane-offset slices of the flattened image: tap (kh,kw)
    # of output pixel (oh,ow) lives at flat index oh*W+ow + kh*W+kw.
    taps = []
    for kh in range(KH):
        for kw in range(KW):
            s = kh * W + kw
            taps.append(x[:, s:s + HoW_pad])          # (Rpad, HoW_pad)
    # Each tap block is exactly one 8-sublane group -> concat is free placement.
    patches = jnp.concatenate(taps, axis=0)           # (KH*KW*Rpad, HoW_pad)

    # One MXU contraction for the whole batch: (Mpad, K) @ (K, HoW_pad).
    o_ref[...] = jnp.dot(
        w_ref[...], patches, preferred_element_type=jnp.float32
    ).astype(o_ref.dtype)


def prepare_weights(w_oihw, N):
    """Hoisted out of the hot path: build the block-diagonal (per image)
    flattened weight matrix once at weight-load time.

    Returns wbig of shape (Mpad, KH*KW*Rpad) with
      wbig[n*Cout+o, t*Rpad + m*Cin + c] = w[o, c, t] * (n == m),
    zero in the sublane-pad columns (rows >= N*Cin) and row-pad rows
    (rows >= N*Cout)."""
    Cout, Cin, KH, KW = w_oihw.shape
    T = KH * KW
    Rpad = pl.cdiv(N * Cin, 8) * 8
    Mpad = pl.cdiv(N * Cout, 8) * 8

    w_taps = jnp.transpose(w_oihw, (2, 3, 0, 1)).reshape(T, Cout, Cin)
    wsmall = jnp.einsum(
        "toc,nm->notmc", w_taps, jnp.eye(N, dtype=w_oihw.dtype)
    ).reshape(N * Cout, T, N * Cin)
    wpad = jnp.pad(
        wsmall, ((0, Mpad - N * Cout), (0, 0), (0, Rpad - N * Cin)))
    return wpad.reshape(Mpad, T * Rpad)


def model_with_submodules_forward(x_nchw, wbig, *, Cout=5, KH=3, KW=3):
    """x_nchw: (N, Cin, H, W) f32; wbig: precomputed via prepare_weights.
    Returns (N, Cout, H-KH+1, W-KW+1) f32 == conv2d(relu(x), W)."""
    N, Cin, H, W = x_nchw.shape
    Ho, Wo = H - KH + 1, W - KW + 1
    HW, HoW, T = H * W, Ho * W, KH * KW

    Rpad = pl.cdiv(N * Cin, 8) * 8            # sublane-aligned row count
    Mpad = pl.cdiv(N * Cout, 8) * 8           # sublane-aligned output rows
    HoW_pad = pl.cdiv(HoW, 128) * 128         # lane-aligned output width
    K = T * Rpad
    assert wbig.shape == (Mpad, K)

    # Lane pad must cover the largest tap-shifted window.
    Lpad = pl.cdiv((KH - 1) * W + (KW - 1) + HoW_pad, 128) * 128

    # Contiguous reshape + zero pad (no transpose): (N*Cin, HW) -> (Rpad, Lpad).
    x_pad = jnp.pad(x_nchw.reshape(N * Cin, HW),
                    ((0, Rpad - N * Cin), (0, Lpad - HW)))

    kernel = functools.partial(
        _relu_conv_kernel, W=W, KH=KH, KW=KW, HoW_pad=HoW_pad)

    cost = pl.CostEstimate(
        flops=2 * Mpad * K * HoW_pad,
        transcendentals=0,
        bytes_accessed=(Rpad * Lpad + Mpad * K + Mpad * HoW_pad) * 4,
    )

    out_flat = pl.pallas_call(
        kernel,
        out_shape=jax.ShapeDtypeStruct((Mpad, HoW_pad), x_nchw.dtype),
        grid=(1,),                      # single step: whole batch at once
        in_specs=[
            pl.BlockSpec((Rpad, Lpad), lambda i: (0, 0)),
            pl.BlockSpec((Mpad, K), lambda i: (0, 0)),
        ],
        out_specs=pl.BlockSpec((Mpad, HoW_pad), lambda i: (0, 0)),
        compiler_params=pltpu.CompilerParams(
            dimension_semantics=("arbitrary",),
        ),
        cost_estimate=cost,
    )(x_pad, wbig)

    # Drop pad rows / pad columns, contiguous reshape to (N, Cout, Ho, W),
    # then drop the KW-1 wrap-around columns -> VALID conv output in NCHW.
    return (out_flat[:N * Cout, :HoW]
            .reshape(N, Cout, Ho, W)[:, :, :, :Wo])


if __name__ == "__main__":
    key = jax.random.PRNGKey(0)
    kx, kw = jax.random.split(key)

    # Shapes fixed by the module: Conv2d(3, 5, 3) -> Cin=3, Cout=5, k=3.
    N, Cin, H, W = 2, 3, 16, 16
    Cout, KH, KW = 5, 3, 3

    x = jax.random.normal(kx, (N, Cin, H, W), dtype=jnp.float32)
    # Deterministic kaiming-uniform-like weight init (no checkpoint needed).
    fan_in = Cin * KH * KW
    bound = 1.0 / (fan_in ** 0.5)
    w = jax.random.uniform(kw, (Cout, Cin, KH, KW), dtype=jnp.float32,
                           minval=-bound, maxval=bound)

    # Weight prep is hoisted out of the per-call path (depends only on w, N).
    wbig = jax.block_until_ready(prepare_weights(w, N))

    out = model_with_submodules_forward(x, wbig, Cout=Cout, KH=KH, KW=KW)
    out = jax.block_until_ready(out)

    # Reference: XLA conv of relu(x).
    ref = jax.lax.conv_general_dilated(
        jnp.maximum(x, 0.0), w, window_strides=(1, 1), padding="VALID",
        dimension_numbers=("NCHW", "OIHW", "NCHW"))
    assert out.shape == (N, Cout, H - KH + 1, W - KW + 1)
    assert jnp.allclose(out, ref, atol=1e-4, rtol=1e-5), float(
        jnp.max(jnp.abs(out - ref)))

    print("KERNEL_OK")
</pallas_src>

<mosaic_0001>
module attributes {stable_mosaic.version = 11 : i64} {
  func.func @_relu_conv_kernel(%arg0: i32, %arg1: memref<8x384xf32, #tpu.memory_space<vmem>>, %arg2: memref<16x72xf32, #tpu.memory_space<vmem>>, %arg3: memref<16x256xf32, #tpu.memory_space<vmem>>) attributes {dimension_semantics = [#tpu.dimension_semantics<arbitrary>], iteration_bounds = array<i64: 1>, scalar_prefetch = 0 : i64, scratch_operands = 0 : i64, tpu.core_type = #tpu.core_type<tc>, window_params = [{pipeline_mode = #tpu.pipeline_mode<synchronous>, transform_indices = @transform_0, window_bounds = array<i64: 8, 384>}, {pipeline_mode = #tpu.pipeline_mode<synchronous>, transform_indices = @transform_1, window_bounds = array<i64: 16, 72>}, {pipeline_mode = #tpu.pipeline_mode<synchronous>, transform_indices = @transform_2, window_bounds = array<i64: 16, 256>}]} {
    %c0 = arith.constant 0 : index
    %c0_0 = arith.constant 0 : index
    %0 = vector.load %arg1[%c0, %c0_0] : memref<8x384xf32, #tpu.memory_space<vmem>>, vector<8x384xf32>
    %cst = arith.constant 0.000000e+00 : f32
    %1 = vector.broadcast %cst : f32 to vector<8x384xf32>
    %2 = arith.maximumf %0, %1 : vector<8x384xf32>
    %3 = vector.extract_strided_slice %2 {offsets = [0, 0], sizes = [8, 256], strides = [1, 1]} : vector<8x384xf32> to vector<8x256xf32>
    %4 = vector.extract_strided_slice %2 {offsets = [0, 1], sizes = [8, 256], strides = [1, 1]} : vector<8x384xf32> to vector<8x256xf32>
    %5 = vector.extract_strided_slice %2 {offsets = [0, 2], sizes = [8, 256], strides = [1, 1]} : vector<8x384xf32> to vector<8x256xf32>
    %6 = vector.extract_strided_slice %2 {offsets = [0, 16], sizes = [8, 256], strides = [1, 1]} : vector<8x384xf32> to vector<8x256xf32>
    %7 = vector.extract_strided_slice %2 {offsets = [0, 17], sizes = [8, 256], strides = [1, 1]} : vector<8x384xf32> to vector<8x256xf32>
    %8 = vector.extract_strided_slice %2 {offsets = [0, 18], sizes = [8, 256], strides = [1, 1]} : vector<8x384xf32> to vector<8x256xf32>
    %9 = vector.extract_strided_slice %2 {offsets = [0, 32], sizes = [8, 256], strides = [1, 1]} : vector<8x384xf32> to vector<8x256xf32>
    %10 = vector.extract_strided_slice %2 {offsets = [0, 33], sizes = [8, 256], strides = [1, 1]} : vector<8x384xf32> to vector<8x256xf32>
    %11 = vector.extract_strided_slice %2 {offsets = [0, 34], sizes = [8, 256], strides = [1, 1]} : vector<8x384xf32> to vector<8x256xf32>
    %12 = tpu.concatenate %3, %4, %5, %6, %7, %8, %9, %10, %11 in 0 : vector<8x256xf32>, vector<8x256xf32>, vector<8x256xf32>, vector<8x256xf32>, vector<8x256xf32>, vector<8x256xf32>, vector<8x256xf32>, vector<8x256xf32>, vector<8x256xf32> -> vector<72x256xf32>
    %c0_1 = arith.constant 0 : index
    %c0_2 = arith.constant 0 : index
    %13 = vector.load %arg2[%c0_1, %c0_2] : memref<16x72xf32, #tpu.memory_space<vmem>>, vector<16x72xf32>
    %cst_3 = arith.constant dense<0.000000e+00> : vector<16x256xf32>
    %14 = tpu.matmul %13, %12, %cst_3 {dimension_numbers = #tpu.dot_dimension_numbers<[1], [0], [0], [1], [0, 0, 1, 1], [], []>} : vector<16x72xf32>, vector<72x256xf32>, vector<16x256xf32> -> vector<16x256xf32>
    %c0_4 = arith.constant 0 : index
    %c0_5 = arith.constant 0 : index
    %15 = vector.load %arg3[%c0_4, %c0_5] : memref<16x256xf32, #tpu.memory_space<vmem>>, vector<16x256xf32>
    tpu.vector_store %arg3[%c0_4, %c0_5], %14 {strides = array<i32>} : memref<16x256xf32, #tpu.memory_space<vmem>>, vector<16x256xf32>,
    return
  }
  func.func @transform_0(%arg0: i32) -> (i32, i32) {
    %c0_i32 = arith.constant 0 : i32
    %c0_i32_0 = arith.constant 0 : i32
    %c0_i32_1 = arith.constant 0 : i32
    return %c0_i32, %c0_i32_0 : i32, i32
  }
  func.func @transform_1(%arg0: i32) -> (i32, i32) {
    %c0_i32 = arith.constant 0 : i32
    %c0_i32_0 = arith.constant 0 : i32
    %c0_i32_1 = arith.constant 0 : i32
    return %c0_i32, %c0_i32_0 : i32, i32
  }
  func.func @transform_2(%arg0: i32) -> (i32, i32) {
    %c0_i32 = arith.constant 0 : i32
    %c0_i32_0 = arith.constant 0 : i32
    %c0_i32_1 = arith.constant 0 : i32
    return %c0_i32, %c0_i32_0 : i32, i32
  }
}

</mosaic_0001>

<llo_original>
// kernel: tpu_custom_call.1
$region0: #{tpu_custom_call.1}
  #allocation0 [shape = 'u32[]', space=smem, size = 0x4, offset = 0x4, fixed_abs, tag = 'smem constant byte address 0x4 - core index']
  #allocation1 [shape = 'u32[144,128]{1,0:T(1,128)}', space=vmem, size = 0x12000, scoped, tag = 'internal scratch']
  %s0 = inlined_call_operand.hbm [shape: f32[8,384], index: 0, kind: input, shape index: {}]
  %s1 = inlined_call_operand.hbm [shape: f32[16,72], index: 1, kind: input, shape index: {}]
  %s2 = inlined_call_operand.hbm [shape: f32[16,256], index: 2, kind: output, shape index: {}]
  %s3 = sld [smem:[#allocation0]]
  $region26: #{tpu_custom_call.1} parent=0
    _
  %s5 = ssub.s32 1, %s3
  %s6 = scalar_select 0, %s5, %s3
  $region1: #{tpu_custom_call.1} parent=0
    #allocation2 [shape = 'u8[12288]{0}', space=vmem, size = 0x3000, scoped, tag = 'input window, operand 0, single buffered']
    #allocation3 [shape = 's32[1]{0}', space=sflag, size = 0x4, scoped, tag = 'scoped memory for tpu_custom_call.1']
    #allocation4 [shape = 's32[1]{0}', space=sflag, size = 0x4, scoped, tag = 'scoped memory for tpu_custom_call.1']
    #allocation5 [shape = 'u8[8192]{0}', space=vmem, size = 0x2000, scoped, tag = 'input window, operand 1, single buffered']
    #allocation6 [shape = 's32[1]{0}', space=sflag, size = 0x4, scoped, tag = 'scoped memory for tpu_custom_call.1']
    #allocation7 [shape = 'u8[16384]{0}', space=vmem, size = 0x4000, scoped, tag = 'output window, operand 0, single buffered']
    %7 = vsyncpa [#allocation3], 0
    %8 = vsyncpa [#allocation6], 0
    %9 = vsyncpa [#allocation4], 0
    // Predicated region
    $region2: #{tpu_custom_call.1} parent=1 // pred_check
      _
    $region3: #{tpu_custom_call.1} parent=1 // pred_check_branch
      %11 = sbr.rel (0) target = $region5
    $region4: #{tpu_custom_call.1} parent=1 // pred_region
      %s13 = ssub.s32 384, 384
      %14 = vsyncadd [#allocation3], %s13
      %s16 = sshll.u32 [#allocation2], 4
      %s17 = int_to_ptr.vmem [resolvable:$true] %s16
      %19 = dma.hbm_to_vmem [thread:$0]  %s0, 384, %s17, [#allocation3]
    $region5: #{tpu_custom_call.1} parent=1 // pred_fallthru
      _
    // Predicated region
    $region6: #{tpu_custom_call.1} parent=1 // pred_check
      _
    $region7: #{tpu_custom_call.1} parent=1 // pred_check_branch
      %21 = sbr.rel (0) target = $region9
    $region8: #{tpu_custom_call.1} parent=1 // pred_region
      %s23 = ssub.s32 256, 256
      %24 = vsyncadd [#allocation6], %s23
      %s25 = sshll.u32 [#allocation5], 4
      %s26 = int_to_ptr.vmem [resolvable:$true] %s25
      %31 = dma.hbm_to_vmem [thread:$0]  %s1, 256, %s26, [#allocation6], 128, 128, 8
    $region9: #{tpu_custom_call.1} parent=1 // pred_fallthru
      _
    // Predicated region
    $region10: #{tpu_custom_call.1} parent=1 // pred_check
      _
    $region11: #{tpu_custom_call.1} parent=1 // pred_check_branch
      %33 = sbr.rel (0) target = $region13
    $region12: #{tpu_custom_call.1} parent=1 // pred_region
      %34 = dma.done [#allocation3], 384
    $region13: #{tpu_custom_call.1} parent=1 // pred_fallthru
      _
    // Predicated region
    $region14: #{tpu_custom_call.1} parent=1 // pred_check
      _
    $region15: #{tpu_custom_call.1} parent=1 // pred_check_branch
      %36 = sbr.rel (0) target = $region17
    $region16: #{tpu_custom_call.1} parent=1 // pred_region
      %37 = dma.done [#allocation6], 256
    $region17: #{tpu_custom_call.1} parent=1 // pred_fallthru
      _
    %v38 = vld [vmem:[#allocation2] sm:$0xff]
    %v39 = vld [vmem:[#allocation2 + $0x8] sm:$0xff]
    %v40 = vld [vmem:[#allocation2 + $0x10] sm:$0xff]
    %v41 = vmax.f32 %v38, 0.0
    %v42 = vmax.f32 %v39, 0.0
    %v43 = vmax.f32 %v40, 0.0
    %47 = vrot.lane.b32.xlu0 %v41, 127
    %v48 = vpop.permute.xlu0 %47
    %49 = vrot.lane.b32.xlu0 %v42, 127
    %v50 = vpop.permute.xlu0 %49
    %51 = vrot.lane.b32.xlu0 %v43, 127
    %v52 = vpop.permute.xlu0 %51
    %vm53 = vcmask 1039360
    %v54 = vsel %vm53, %v48, %v50
    %v55 = vsel %vm53, %v50, %v52
    %58 = vrot.lane.b32.xlu0 %v41, 126
    %v59 = vpop.permute.xlu0 %58
    %60 = vrot.lane.b32.xlu0 %v42, 126
    %v61 = vpop.permute.xlu0 %60
    %62 = vrot.lane.b32.xlu0 %v43, 126
    %v63 = vpop.permute.xlu0 %62
    %vm64 = vcmask 1031168
    %v65 = vsel %vm64, %v59, %v61
    %v66 = vsel %vm64, %v61, %v63
    %69 = vrot.lane.b32.xlu0 %v41, 112
    %v70 = vpop.permute.xlu0 %69
    %71 = vrot.lane.b32.xlu0 %v42, 112
    %v72 = vpop.permute.xlu0 %71
    %73 = vrot.lane.b32.xlu0 %v43, 112
    %v74 = vpop.permute.xlu0 %73
    %vm75 = vcmask 916480
    %v76 = vsel %vm75, %v70, %v72
    %v77 = vsel %vm75, %v72, %v74
    %80 = vrot.lane.b32.xlu0 %v41, 111
    %v81 = vpop.permute.xlu0 %80
    %82 = vrot.lane.b32.xlu0 %v42, 111
    %v83 = vpop.permute.xlu0 %82
    %84 = vrot.lane.b32.xlu0 %v43, 111
    %v85 = vpop.permute.xlu0 %84
    %vm86 = vcmask 908288
    %v87 = vsel %vm86, %v81, %v83
    %v88 = vsel %vm86, %v83, %v85
    %91 = vrot.lane.b32.xlu0 %v41, 110
    %v92 = vpop.permute.xlu0 %91
    %93 = vrot.lane.b32.xlu0 %v42, 110
    %v94 = vpop.permute.xlu0 %93
    %95 = vrot.lane.b32.xlu0 %v43, 110
    %v96 = vpop.permute.xlu0 %95
    %vm97 = vcmask 900096
    %v98 = vsel %vm97, %v92, %v94
    %v99 = vsel %vm97, %v94, %v96
    %102 = vrot.lane.b32.xlu0 %v41, 96
    %v103 = vpop.permute.xlu0 %102
    %104 = vrot.lane.b32.xlu0 %v42, 96
    %v105 = vpop.permute.xlu0 %104
    %106 = vrot.lane.b32.xlu0 %v43, 96
    %v107 = vpop.permute.xlu0 %106
    %vm108 = vcmask 785408
    %v109 = vsel %vm108, %v103, %v105
    %v110 = vsel %vm108, %v105, %v107
    %113 = vrot.lane.b32.xlu0 %v41, 95
    %v114 = vpop.permute.xlu0 %113
    %115 = vrot.lane.b32.xlu0 %v42, 95
    %v116 = vpop.permute.xlu0 %115
    %117 = vrot.lane.b32.xlu0 %v43, 95
    %v118 = vpop.permute.xlu0 %117
    %vm119 = vcmask 777216
    %v120 = vsel %vm119, %v114, %v116
    %v121 = vsel %vm119, %v116, %v118
    %124 = vrot.lane.b32.xlu0 %v41, 94
    %v125 = vpop.permute.xlu0 %124
    %126 = vrot.lane.b32.xlu0 %v42, 94
    %v127 = vpop.permute.xlu0 %126
    %128 = vrot.lane.b32.xlu0 %v43, 94
    %v129 = vpop.permute.xlu0 %128
    %vm130 = vcmask 769024
    %v131 = vsel %vm130, %v125, %v127
    %v132 = vsel %vm130, %v127, %v129
    %v135 = vld [vmem:[#allocation5] sm:$0xff]
    %v136 = vld [vmem:[#allocation5 + $0x8] sm:$0xff]
    %vm137 = vcmask 588800
    %v139 = vsel %vm137, %v135, 0
    %v142 = vsel %vm137, %v136, 0
    %144 = vmatprep.subr.mxu0 %v42
    %145 = vmatpush1.msra.mxu0 %v41
    %146 = vmatprep.subr.mxu0 %v55
    %147 = vmatpush1.msra.mxu0 %v54
    %148 = vmatprep.subr.mxu0 %v66
    %149 = vmatpush1.msra.mxu0 %v65
    %150 = vmatprep.subr.mxu0 %v77
    %151 = vmatpush1.msra.mxu0 %v76
    %152 = vmatprep.subr.mxu0 %v88
    %153 = vmatpush1.msra.mxu0 %v87
    %154 = vmatprep.subr.mxu0 %v99
    %155 = vmatpush1.msra.mxu0 %v98
    %156 = vmatprep.subr.mxu0 %v110
    %157 = vmatpush1.msra.mxu0 %v109
    %158 = vmatprep.subr.mxu0 %v121
    %159 = vmatpush1.msra.mxu0 %v120
    %160 = vmatprep.subr.mxu0 %v132
    %161 = vmatpush1.msra.mxu0 %v131
    %162 = vmatprep.subr.mxu0 0.0
    %163 = vmatpush1.msra.mxu0 0.0
    %164 = vmatprep.subr.mxu0 0.0
    %165 = vmatpush1.msra.mxu0 0.0
    %166 = vmatprep.subr.mxu0 0.0
    %167 = vmatpush1.msra.mxu0 0.0
    %168 = vmatprep.subr.mxu0 0.0
    %169 = vmatpush1.msra.mxu0 0.0
    %170 = vmatprep.subr.mxu0 0.0
    %171 = vmatpush1.msra.mxu0 0.0
    %172 = vmatprep.subr.mxu0 0.0
    %173 = vmatpush1.msra.mxu0 0.0
    %174 = vmatprep.subr.mxu0 0.0
    %175 = vmatpush1.msra.mxu0 0.0
    %176 = vmatprep.subr.mxu0 0.0
    %177 = vmatpush1.msra.mxu0 0.0
    %178 = vmatprep.subr.mxu0 0.0
    %179 = vmatpush1.msra.mxu0 0.0
    %180 = vmatprep.subr.mxu0 0.0
    %181 = vmatpush1.msra.mxu0 0.0
    %182 = vmatprep.subr.mxu0 0.0
    %183 = vmatpush1.msra.mxu0 0.0
    %184 = vmatprep.subr.mxu0 0.0
    %185 = vmatpush1.msra.mxu0 0.0
    %186 = vmatprep.subr.mxu0 0.0
    %187 = vmatpush1.msra.mxu0 0.0
    %188 = vmatprep.subr.mxu0 0.0
    %189 = vmatpush1.msra.mxu0 0.0
    %190 = vmatprep.subr.mxu0 0.0
    %191 = vmatpush1.msra.mxu0 0.0
    %192 = vmatprep.subr.mxu0 0.0
    %193 = vmatpush1.msra.mxu0 0.0
    %194 = vmatprep.subr.mxu0 0.0
    %195 = vmatpush1.msra.mxu0 0.0
    %196 = vmatprep.subr.mxu0 0.0
    %197 = vmatpush1.msra.mxu0 0.0
    %198 = vmatprep.subr.mxu0 0.0
    %199 = vmatpush1.msra.mxu0 0.0
    %200 = vmatprep.subr.mxu0 0.0
    %201 = vmatpush1.msra.mxu0 0.0
    %202 = vmatprep.subr.mxu0 0.0
    %203 = vmatpush1.msra.mxu0 0.0
    %204 = vmatprep.subr.mxu0 0.0
    %205 = vmatpush1.msra.mxu0 0.0
    %206 = vmatprep.subr.mxu0 0.0
    %207 = vmatpush1.msra.mxu0 0.0
    %208 = vmatprep.mubr.f32.mxu0 0.0
    %209 = vmatmul.mubr.f32.gmra.mrb[0].mxu0 %v139
    %v210 = vpop.f32.mrb[0].mxu0
    %v211 = vadd.f32 0.0, %v210
    %v212 = vpop.f32.mrb[0].mxu0
    %v213 = vadd.f32 0.0, %v212
    %214 = vmatprep.mubr.f32.mxu0 0.0
    %215 = vmatmul.mubr.f32.gmra.mrb[0].mxu0 %v142
    %v216 = vpop.f32.mrb[0].mxu0
    %v217 = vadd.f32 0.0, %v216
    %v218 = vpop.f32.mrb[0].mxu0
    %v219 = vadd.f32 0.0, %v218
    %220 = vdwg.mxu0
    %221 = vst [vmem:[#allocation7] sm:$0xff] %v211
    %222 = vst [vmem:[#allocation7 + $0x8] sm:$0xff] %v213
    %223 = vst [vmem:[#allocation7 + $0x10] sm:$0xff] %v217
    %224 = vst [vmem:[#allocation7 + $0x18] sm:$0xff] %v219
    // Predicated region
    $region18: #{tpu_custom_call.1} parent=1 // pred_check
      _
    $region19: #{tpu_custom_call.1} parent=1 // pred_check_branch
      %226 = sbr.rel (0) target = $region21
    $region20: #{tpu_custom_call.1} parent=1 // pred_region
      %s228 = ssub.s32 512, 512
      %229 = vsyncadd [#allocation4], %s228
      %s230 = sshll.u32 [#allocation7], 4
      %s231 = int_to_ptr.vmem [resolvable:$true] %s230
      %236 = dma.vmem_to_hbm [thread:$0]  %s231, 512, %s2, [#allocation4], 256, 256, 16
    $region21: #{tpu_custom_call.1} parent=1 // pred_fallthru
      _
    // Predicated region
    $region22: #{tpu_custom_call.1} parent=1 // pred_check
      _
    $region23: #{tpu_custom_call.1} parent=1 // pred_check_branch
      %238 = sbr.rel (0) target = $region25
    $region24: #{tpu_custom_call.1} parent=1 // pred_region
      %239 = dma.done [#allocation4], 512
    $region25: #{tpu_custom_call.1} parent=1 // pred_fallthru
      _
    %240 = vsyncpa [#allocation3], 1
    %241 = vsyncpa [#allocation6], 1
    %242 = vsyncpa [#allocation4], 1

</llo_original>
